<compile_context>
chip_gen: v7x
topology: tpu7x:2x2x1
jax: 0.10.0
libtpu: 0.0.40
codegen_flags: <defaults>
</compile_context>

<pallas_src>
import functools

import jax
import jax.numpy as jnp
from jax.experimental import pallas as pl
from jax.experimental.pallas import tpu as pltpu


def _round_up(x, m):
    return ((x + m - 1) // m) * m


def _encoder_lstm_kernel(tok_ref, x_ref, w_ref, b_ref, h0_ref, c0_ref,
                         y_ref, hn_ref, cn_ref, *, num_layers, hp):
    """All LSTM layers for one (1, Hp) timestep, in a single grid step."""
    del tok_ref  # token id is consumed by the embedding BlockSpec index_map
    Hp = hp

    x = x_ref[0]                                     # (1, Hp) embedded token

    # Static unroll over layers (L is a small compile-time constant).
    for l in range(num_layers):
        h_prev = h0_ref[l]                           # (1, Hp)
        c_prev = c0_ref[l]                           # (1, Hp)

        # Fused input+hidden matmul on the MXU: (1, 2Hp) @ (2Hp, 4Hp).
        xh = jnp.concatenate([x, h_prev], axis=-1)   # (1, 2Hp)
        gates = jnp.dot(xh, w_ref[l],
                        preferred_element_type=jnp.float32) + b_ref[l]

        # PyTorch gate order i, f, g, o; each span is 128-lane aligned.
        i = jax.nn.sigmoid(gates[:, 0 * Hp:1 * Hp])
        f = jax.nn.sigmoid(gates[:, 1 * Hp:2 * Hp])
        g = jnp.tanh(gates[:, 2 * Hp:3 * Hp])
        o = jax.nn.sigmoid(gates[:, 3 * Hp:4 * Hp])

        c_new = f * c_prev + i * g
        h_new = o * jnp.tanh(c_new)

        hn_ref[l] = h_new
        cn_ref[l] = c_new
        x = h_new                                    # feeds the next layer

    y_ref[0] = x                                     # top-layer output, once


def pack_params(raw, hidden_size):
    """Pack PyTorch-style LSTM params into the fused, lane-padded layout."""
    H = hidden_size
    Hp = _round_up(H, 128)
    L = raw["w_ih"].shape[0]
    V = raw["embedding"].shape[0]

    emb_p = jnp.zeros((V, 1, Hp), jnp.float32).at[:, 0, :H].set(
        raw["embedding"].astype(jnp.float32))

    w_ih_t = jnp.transpose(raw["w_ih"], (0, 2, 1))   # (L, H, 4H)
    w_hh_t = jnp.transpose(raw["w_hh"], (0, 2, 1))   # (L, H, 4H)
    bias = raw["b_ih"] + raw["b_hh"]                 # (L, 4H)

    w_packed = jnp.zeros((L, 2 * Hp, 4 * Hp), jnp.float32)
    bias_p = jnp.zeros((L, 1, 4 * Hp), jnp.float32)
    for g in range(4):                               # gate-aligned column slabs
        w_packed = w_packed.at[:, :H, g * Hp:g * Hp + H].set(
            w_ih_t[:, :, g * H:(g + 1) * H])
        w_packed = w_packed.at[:, Hp:Hp + H, g * Hp:g * Hp + H].set(
            w_hh_t[:, :, g * H:(g + 1) * H])
        bias_p = bias_p.at[:, 0, g * Hp:g * Hp + H].set(
            bias[:, g * H:(g + 1) * H])

    return {"embedding_p": emb_p, "w_packed": w_packed, "bias_p": bias_p,
            "H": H, "Hp": Hp, "L": L}


def encoder_lstm_forward(token_id, hidden, kp):
    """Equivalent of EncoderLSTM.forward(input, hidden) in eval mode."""
    h0, c0 = hidden                                  # (L, 1, H) each
    H, Hp, L = kp["H"], kp["Hp"], kp["L"]

    tok = jnp.reshape(token_id, (1,)).astype(jnp.int32)
    pad = [(0, 0), (0, 0), (0, Hp - H)]
    h0_p = jnp.pad(h0.astype(jnp.float32), pad)      # zero lanes stay zero
    c0_p = jnp.pad(c0.astype(jnp.float32), pad)

    kernel = functools.partial(_encoder_lstm_kernel, num_layers=L, hp=Hp)

    out_shapes = (
        jax.ShapeDtypeStruct((1, 1, Hp), jnp.float32),           # output
        jax.ShapeDtypeStruct((L, 1, Hp), jnp.float32),           # h_n
        jax.ShapeDtypeStruct((L, 1, Hp), jnp.float32),           # c_n
    )

    grid_spec = pltpu.PrefetchScalarGridSpec(
        num_scalar_prefetch=1,                        # token id -> SMEM
        grid=(1,),                                    # single fused grid step
        in_specs=[
            # embedding: data-dependent row select via the prefetched token id
            pl.BlockSpec((1, 1, Hp), lambda i, tok: (tok[0], 0, 0)),
            pl.BlockSpec((L, 2 * Hp, 4 * Hp), lambda i, tok: (0, 0, 0)),
            pl.BlockSpec((L, 1, 4 * Hp), lambda i, tok: (0, 0, 0)),
            pl.BlockSpec((L, 1, Hp), lambda i, tok: (0, 0, 0)),
            pl.BlockSpec((L, 1, Hp), lambda i, tok: (0, 0, 0)),
        ],
        out_specs=[
            pl.BlockSpec((1, 1, Hp), lambda i, tok: (0, 0, 0)),
            pl.BlockSpec((L, 1, Hp), lambda i, tok: (0, 0, 0)),
            pl.BlockSpec((L, 1, Hp), lambda i, tok: (0, 0, 0)),
        ],
    )

    y_p, hn_p, cn_p = pl.pallas_call(
        kernel,
        out_shape=out_shapes,
        grid_spec=grid_spec,
        compiler_params=pltpu.CompilerParams(
            dimension_semantics=("arbitrary",)),
    )(tok, kp["embedding_p"], kp["w_packed"], kp["bias_p"], h0_p, c0_p)

    # Strip lane padding back to the module's shapes.
    y = y_p[:, :, :H]
    h_n = hn_p[:, :, :H]
    c_n = cn_p[:, :, :H]
    return y, (h_n, c_n)


def _reference_forward(token_id, hidden, raw):
    """Pure-JAX reference (unfused, unpadded) for numerical validation."""
    h0, c0 = hidden
    L, _, H = h0.shape
    x = raw["embedding"][token_id].reshape(1, H).astype(jnp.float32)
    w_ih_t = jnp.transpose(raw["w_ih"], (0, 2, 1))
    w_hh_t = jnp.transpose(raw["w_hh"], (0, 2, 1))
    bias = (raw["b_ih"] + raw["b_hh"]).reshape(L, 1, 4 * H)
    hs, cs = [], []
    for l in range(L):
        gates = x @ w_ih_t[l] + h0[l] @ w_hh_t[l] + bias[l]
        i = jax.nn.sigmoid(gates[:, 0:H])
        f = jax.nn.sigmoid(gates[:, H:2 * H])
        g = jnp.tanh(gates[:, 2 * H:3 * H])
        o = jax.nn.sigmoid(gates[:, 3 * H:4 * H])
        c_new = f * c0[l] + i * g
        h_new = o * jnp.tanh(c_new)
        hs.append(h_new)
        cs.append(c_new)
        x = h_new
    return x.reshape(1, 1, H), (jnp.stack(hs), jnp.stack(cs))


def init_params(key, input_size, hidden_size, num_layers):
    """Deterministic synthetic PyTorch-style parameters."""
    H = hidden_size
    k_emb, k_wih, k_whh, k_bih, k_bhh = jax.random.split(key, 5)
    bound = 1.0 / jnp.sqrt(jnp.float32(H))
    emb = jax.random.normal(k_emb, (input_size, H), jnp.float32)
    w_ih = jax.random.uniform(k_wih, (num_layers, 4 * H, H), jnp.float32,
                              -bound, bound)
    w_hh = jax.random.uniform(k_whh, (num_layers, 4 * H, H), jnp.float32,
                              -bound, bound)
    b_ih = jax.random.uniform(k_bih, (num_layers, 4 * H), jnp.float32,
                              -bound, bound)
    b_hh = jax.random.uniform(k_bhh, (num_layers, 4 * H), jnp.float32,
                              -bound, bound)
    return {"embedding": emb, "w_ih": w_ih, "w_hh": w_hh,
            "b_ih": b_ih, "b_hh": b_hh}


if __name__ == "__main__":
    INPUT_SIZE = 16     # vocab size
    HIDDEN = 32
    NUM_LAYERS = 2

    key = jax.random.PRNGKey(0)
    raw_params = init_params(key, INPUT_SIZE, HIDDEN, NUM_LAYERS)
    kernel_params = pack_params(raw_params, HIDDEN)

    token = jnp.int32(3)                                   # scalar token index
    h0 = jnp.zeros((NUM_LAYERS, 1, HIDDEN), jnp.float32)   # initHidden()
    c0 = jnp.zeros((NUM_LAYERS, 1, HIDDEN), jnp.float32)   # initCell()

    y, (h_n, c_n) = encoder_lstm_forward(token, (h0, c0), kernel_params)
    jax.block_until_ready((y, h_n, c_n))

    y_ref, (h_ref, c_ref) = _reference_forward(token, (h0, c0), raw_params)

    # Tolerance allows for f32 MXU accumulation-order differences between the
    # fused (single packed dot) and unfused (two dots) formulations.
    assert jnp.allclose(y, y_ref, atol=1e-3, rtol=1e-3), "output mismatch"
    assert jnp.allclose(h_n, h_ref, atol=1e-3, rtol=1e-3), "h_n mismatch"
    assert jnp.allclose(c_n, c_ref, atol=1e-3, rtol=1e-3), "c_n mismatch"

    print("KERNEL_OK")
</pallas_src>

<mosaic_0001>
module attributes {stable_mosaic.version = 11 : i64} {
  func.func @_encoder_lstm_kernel(%arg0: i32, %arg1: memref<1xi32, #tpu.memory_space<smem>>, %arg2: memref<1x1x128xf32, #tpu.memory_space<vmem>>, %arg3: memref<2x256x512xf32, #tpu.memory_space<vmem>>, %arg4: memref<2x1x512xf32, #tpu.memory_space<vmem>>, %arg5: memref<2x1x128xf32, #tpu.memory_space<vmem>>, %arg6: memref<2x1x128xf32, #tpu.memory_space<vmem>>, %arg7: memref<1x1x128xf32, #tpu.memory_space<vmem>>, %arg8: memref<2x1x128xf32, #tpu.memory_space<vmem>>, %arg9: memref<2x1x128xf32, #tpu.memory_space<vmem>>) attributes {dimension_semantics = [#tpu.dimension_semantics<arbitrary>], iteration_bounds = array<i64: 1>, scalar_prefetch = 1 : i64, scratch_operands = 0 : i64, tpu.core_type = #tpu.core_type<tc>, window_params = [{transform_indices = @transform_0, window_bounds = array<i64: 1, 1, 128>}, {pipeline_mode = #tpu.pipeline_mode<synchronous>, transform_indices = @transform_1, window_bounds = array<i64: 2, 256, 512>}, {pipeline_mode = #tpu.pipeline_mode<synchronous>, transform_indices = @transform_2, window_bounds = array<i64: 2, 1, 512>}, {pipeline_mode = #tpu.pipeline_mode<synchronous>, transform_indices = @transform_3, window_bounds = array<i64: 2, 1, 128>}, {pipeline_mode = #tpu.pipeline_mode<synchronous>, transform_indices = @transform_4, window_bounds = array<i64: 2, 1, 128>}, {pipeline_mode = #tpu.pipeline_mode<synchronous>, transform_indices = @transform_5, window_bounds = array<i64: 1, 1, 128>}, {pipeline_mode = #tpu.pipeline_mode<synchronous>, transform_indices = @transform_6, window_bounds = array<i64: 2, 1, 128>}, {pipeline_mode = #tpu.pipeline_mode<synchronous>, transform_indices = @transform_7, window_bounds = array<i64: 2, 1, 128>}]} {
    %c0 = arith.constant 0 : index
    %c0_0 = arith.constant 0 : index
    %c0_1 = arith.constant 0 : index
    %0 = vector.load %arg2[%c0, %c0_0, %c0_1] : memref<1x1x128xf32, #tpu.memory_space<vmem>>, vector<1x1x128xf32>
    %1 = vector.shape_cast %0 : vector<1x1x128xf32> to vector<1x128xf32>
    %c0_2 = arith.constant 0 : index
    %c0_3 = arith.constant 0 : index
    %c0_4 = arith.constant 0 : index
    %2 = vector.load %arg5[%c0_2, %c0_3, %c0_4] : memref<2x1x128xf32, #tpu.memory_space<vmem>>, vector<1x1x128xf32>
    %3 = vector.shape_cast %2 : vector<1x1x128xf32> to vector<1x128xf32>
    %c0_5 = arith.constant 0 : index
    %c0_6 = arith.constant 0 : index
    %c0_7 = arith.constant 0 : index
    %4 = vector.load %arg6[%c0_5, %c0_6, %c0_7] : memref<2x1x128xf32, #tpu.memory_space<vmem>>, vector<1x1x128xf32>
    %5 = vector.shape_cast %4 : vector<1x1x128xf32> to vector<1x128xf32>
    %6 = tpu.concatenate %1, %3 in 1 : vector<1x128xf32>, vector<1x128xf32> -> vector<1x256xf32>
    %c0_8 = arith.constant 0 : index
    %c0_9 = arith.constant 0 : index
    %c0_10 = arith.constant 0 : index
    %7 = vector.load %arg3[%c0_8, %c0_9, %c0_10] : memref<2x256x512xf32, #tpu.memory_space<vmem>>, vector<1x256x512xf32>
    %8 = vector.shape_cast %7 : vector<1x256x512xf32> to vector<256x512xf32>
    %cst = arith.constant dense<0.000000e+00> : vector<1x512xf32>
    %9 = tpu.matmul %6, %8, %cst {dimension_numbers = #tpu.dot_dimension_numbers<[1], [0], [0], [1], [0, 0, 1, 1], [], []>} : vector<1x256xf32>, vector<256x512xf32>, vector<1x512xf32> -> vector<1x512xf32>
    %c0_11 = arith.constant 0 : index
    %c0_12 = arith.constant 0 : index
    %c0_13 = arith.constant 0 : index
    %10 = vector.load %arg4[%c0_11, %c0_12, %c0_13] : memref<2x1x512xf32, #tpu.memory_space<vmem>>, vector<1x1x512xf32>
    %11 = vector.shape_cast %10 : vector<1x1x512xf32> to vector<1x512xf32>
    %12 = arith.addf %9, %11 : vector<1x512xf32>
    %13 = vector.extract_strided_slice %12 {offsets = [0, 0], sizes = [1, 128], strides = [1, 1]} : vector<1x512xf32> to vector<1x128xf32>
    %14 = arith.negf %13 : vector<1x128xf32>
    %15 = math.exp %14 : vector<1x128xf32>
    %cst_14 = arith.constant 1.000000e+00 : f32
    %16 = vector.broadcast %cst_14 : f32 to vector<1x128xf32>
    %17 = arith.addf %16, %15 : vector<1x128xf32>
    %18 = arith.divf %16, %17 : vector<1x128xf32>
    %19 = vector.extract_strided_slice %12 {offsets = [0, 128], sizes = [1, 128], strides = [1, 1]} : vector<1x512xf32> to vector<1x128xf32>
    %20 = arith.negf %19 : vector<1x128xf32>
    %21 = math.exp %20 : vector<1x128xf32>
    %cst_15 = arith.constant 1.000000e+00 : f32
    %22 = vector.broadcast %cst_15 : f32 to vector<1x128xf32>
    %23 = arith.addf %22, %21 : vector<1x128xf32>
    %24 = arith.divf %22, %23 : vector<1x128xf32>
    %25 = vector.extract_strided_slice %12 {offsets = [0, 256], sizes = [1, 128], strides = [1, 1]} : vector<1x512xf32> to vector<1x128xf32>
    %26 = math.tanh %25 : vector<1x128xf32>
    %27 = vector.extract_strided_slice %12 {offsets = [0, 384], sizes = [1, 128], strides = [1, 1]} : vector<1x512xf32> to vector<1x128xf32>
    %28 = arith.negf %27 : vector<1x128xf32>
    %29 = math.exp %28 : vector<1x128xf32>
    %cst_16 = arith.constant 1.000000e+00 : f32
    %30 = vector.broadcast %cst_16 : f32 to vector<1x128xf32>
    %31 = arith.addf %30, %29 : vector<1x128xf32>
    %32 = arith.divf %30, %31 : vector<1x128xf32>
    %33 = arith.mulf %24, %5 : vector<1x128xf32>
    %34 = arith.mulf %18, %26 : vector<1x128xf32>
    %35 = arith.addf %33, %34 : vector<1x128xf32>
    %36 = math.tanh %35 : vector<1x128xf32>
    %37 = arith.mulf %32, %36 : vector<1x128xf32>
    %c0_17 = arith.constant 0 : index
    %c0_18 = arith.constant 0 : index
    %c0_19 = arith.constant 0 : index
    %38 = vector.load %arg8[%c0_17, %c0_18, %c0_19] : memref<2x1x128xf32, #tpu.memory_space<vmem>>, vector<1x1x128xf32>
    %39 = vector.shape_cast %38 : vector<1x1x128xf32> to vector<1x128xf32>
    %40 = vector.shape_cast %37 : vector<1x128xf32> to vector<1x1x128xf32>
    tpu.vector_store %arg8[%c0_17, %c0_18, %c0_19], %40 {strides = array<i32>} : memref<2x1x128xf32, #tpu.memory_space<vmem>>, vector<1x1x128xf32>,
    %c0_20 = arith.constant 0 : index
    %c0_21 = arith.constant 0 : index
    %c0_22 = arith.constant 0 : index
    %41 = vector.load %arg9[%c0_20, %c0_21, %c0_22] : memref<2x1x128xf32, #tpu.memory_space<vmem>>, vector<1x1x128xf32>
    %42 = vector.shape_cast %41 : vector<1x1x128xf32> to vector<1x128xf32>
    %43 = vector.shape_cast %35 : vector<1x128xf32> to vector<1x1x128xf32>
    tpu.vector_store %arg9[%c0_20, %c0_21, %c0_22], %43 {strides = array<i32>} : memref<2x1x128xf32, #tpu.memory_space<vmem>>, vector<1x1x128xf32>,
    %c1 = arith.constant 1 : index
    %c0_23 = arith.constant 0 : index
    %c0_24 = arith.constant 0 : index
    %44 = vector.load %arg5[%c1, %c0_23, %c0_24] : memref<2x1x128xf32, #tpu.memory_space<vmem>>, vector<1x1x128xf32>
    %45 = vector.shape_cast %44 : vector<1x1x128xf32> to vector<1x128xf32>
    %c1_25 = arith.constant 1 : index
    %c0_26 = arith.constant 0 : index
    %c0_27 = arith.constant 0 : index
    %46 = vector.load %arg6[%c1_25, %c0_26, %c0_27] : memref<2x1x128xf32, #tpu.memory_space<vmem>>, vector<1x1x128xf32>
    %47 = vector.shape_cast %46 : vector<1x1x128xf32> to vector<1x128xf32>
    %48 = tpu.concatenate %37, %45 in 1 : vector<1x128xf32>, vector<1x128xf32> -> vector<1x256xf32>
    %c1_28 = arith.constant 1 : index
    %c0_29 = arith.constant 0 : index
    %c0_30 = arith.constant 0 : index
    %49 = vector.load %arg3[%c1_28, %c0_29, %c0_30] : memref<2x256x512xf32, #tpu.memory_space<vmem>>, vector<1x256x512xf32>
    %50 = vector.shape_cast %49 : vector<1x256x512xf32> to vector<256x512xf32>
    %cst_31 = arith.constant dense<0.000000e+00> : vector<1x512xf32>
    %51 = tpu.matmul %48, %50, %cst_31 {dimension_numbers = #tpu.dot_dimension_numbers<[1], [0], [0], [1], [0, 0, 1, 1], [], []>} : vector<1x256xf32>, vector<256x512xf32>, vector<1x512xf32> -> vector<1x512xf32>
    %c1_32 = arith.constant 1 : index
    %c0_33 = arith.constant 0 : index
    %c0_34 = arith.constant 0 : index
    %52 = vector.load %arg4[%c1_32, %c0_33, %c0_34] : memref<2x1x512xf32, #tpu.memory_space<vmem>>, vector<1x1x512xf32>
    %53 = vector.shape_cast %52 : vector<1x1x512xf32> to vector<1x512xf32>
    %54 = arith.addf %51, %53 : vector<1x512xf32>
    %55 = vector.extract_strided_slice %54 {offsets = [0, 0], sizes = [1, 128], strides = [1, 1]} : vector<1x512xf32> to vector<1x128xf32>
    %56 = arith.negf %55 : vector<1x128xf32>
    %57 = math.exp %56 : vector<1x128xf32>
    %cst_35 = arith.constant 1.000000e+00 : f32
    %58 = vector.broadcast %cst_35 : f32 to vector<1x128xf32>
    %59 = arith.addf %58, %57 : vector<1x128xf32>
    %60 = arith.divf %58, %59 : vector<1x128xf32>
    %61 = vector.extract_strided_slice %54 {offsets = [0, 128], sizes = [1, 128], strides = [1, 1]} : vector<1x512xf32> to vector<1x128xf32>
    %62 = arith.negf %61 : vector<1x128xf32>
    %63 = math.exp %62 : vector<1x128xf32>
    %cst_36 = arith.constant 1.000000e+00 : f32
    %64 = vector.broadcast %cst_36 : f32 to vector<1x128xf32>
    %65 = arith.addf %64, %63 : vector<1x128xf32>
    %66 = arith.divf %64, %65 : vector<1x128xf32>
    %67 = vector.extract_strided_slice %54 {offsets = [0, 256], sizes = [1, 128], strides = [1, 1]} : vector<1x512xf32> to vector<1x128xf32>
    %68 = math.tanh %67 : vector<1x128xf32>
    %69 = vector.extract_strided_slice %54 {offsets = [0, 384], sizes = [1, 128], strides = [1, 1]} : vector<1x512xf32> to vector<1x128xf32>
    %70 = arith.negf %69 : vector<1x128xf32>
    %71 = math.exp %70 : vector<1x128xf32>
    %cst_37 = arith.constant 1.000000e+00 : f32
    %72 = vector.broadcast %cst_37 : f32 to vector<1x128xf32>
    %73 = arith.addf %72, %71 : vector<1x128xf32>
    %74 = arith.divf %72, %73 : vector<1x128xf32>
    %75 = arith.mulf %66, %47 : vector<1x128xf32>
    %76 = arith.mulf %60, %68 : vector<1x128xf32>
    %77 = arith.addf %75, %76 : vector<1x128xf32>
    %78 = math.tanh %77 : vector<1x128xf32>
    %79 = arith.mulf %74, %78 : vector<1x128xf32>
    %c1_38 = arith.constant 1 : index
    %c0_39 = arith.constant 0 : index
    %c0_40 = arith.constant 0 : index
    %80 = vector.load %arg8[%c1_38, %c0_39, %c0_40] : memref<2x1x128xf32, #tpu.memory_space<vmem>>, vector<1x1x128xf32>
    %81 = vector.shape_cast %80 : vector<1x1x128xf32> to vector<1x128xf32>
    %82 = vector.shape_cast %79 : vector<1x128xf32> to vector<1x1x128xf32>
    tpu.vector_store %arg8[%c1_38, %c0_39, %c0_40], %82 {strides = array<i32>} : memref<2x1x128xf32, #tpu.memory_space<vmem>>, vector<1x1x128xf32>,
    %c1_41 = arith.constant 1 : index
    %c0_42 = arith.constant 0 : index
    %c0_43 = arith.constant 0 : index
    %83 = vector.load %arg9[%c1_41, %c0_42, %c0_43] : memref<2x1x128xf32, #tpu.memory_space<vmem>>, vector<1x1x128xf32>
    %84 = vector.shape_cast %83 : vector<1x1x128xf32> to vector<1x128xf32>
    %85 = vector.shape_cast %77 : vector<1x128xf32> to vector<1x1x128xf32>
    tpu.vector_store %arg9[%c1_41, %c0_42, %c0_43], %85 {strides = array<i32>} : memref<2x1x128xf32, #tpu.memory_space<vmem>>, vector<1x1x128xf32>,
    %c0_44 = arith.constant 0 : index
    %c0_45 = arith.constant 0 : index
    %c0_46 = arith.constant 0 : index
    %86 = vector.load %arg7[%c0_44, %c0_45, %c0_46] : memref<1x1x128xf32, #tpu.memory_space<vmem>>, vector<1x1x128xf32>
    %87 = vector.shape_cast %86 : vector<1x1x128xf32> to vector<1x128xf32>
    %88 = vector.shape_cast %79 : vector<1x128xf32> to vector<1x1x128xf32>
    tpu.vector_store %arg7[%c0_44, %c0_45, %c0_46], %88 {strides = array<i32>} : memref<1x1x128xf32, #tpu.memory_space<vmem>>, vector<1x1x128xf32>,
    return
  }
  func.func @transform_0(%arg0: i32, %arg1: memref<1xi32, #tpu.memory_space<smem>>) -> (i32, i32, i32) {
    %c0 = arith.constant 0 : index
    %0 = memref.load %arg1[%c0] : memref<1xi32, #tpu.memory_space<smem>>
    %c0_i32 = arith.constant 0 : i32
    %c0_i32_0 = arith.constant 0 : i32
    %c0_i32_1 = arith.constant 0 : i32
    return %0, %c0_i32, %c0_i32_0 : i32, i32, i32
  }
  func.func @transform_1(%arg0: i32, %arg1: memref<1xi32, #tpu.memory_space<smem>>) -> (i32, i32, i32) {
    %c0_i32 = arith.constant 0 : i32
    %c0_i32_0 = arith.constant 0 : i32
    %c0_i32_1 = arith.constant 0 : i32
    %c0_i32_2 = arith.constant 0 : i32
    return %c0_i32, %c0_i32_0, %c0_i32_1 : i32, i32, i32
  }
  func.func @transform_2(%arg0: i32, %arg1: memref<1xi32, #tpu.memory_space<smem>>) -> (i32, i32, i32) {
    %c0_i32 = arith.constant 0 : i32
    %c0_i32_0 = arith.constant 0 : i32
    %c0_i32_1 = arith.constant 0 : i32
    %c0_i32_2 = arith.constant 0 : i32
    return %c0_i32, %c0_i32_0, %c0_i32_1 : i32, i32, i32
  }
  func.func @transform_3(%arg0: i32, %arg1: memref<1xi32, #tpu.memory_space<smem>>) -> (i32, i32, i32) {
    %c0_i32 = arith.constant 0 : i32
    %c0_i32_0 = arith.constant 0 : i32
    %c0_i32_1 = arith.constant 0 : i32
    %c0_i32_2 = arith.constant 0 : i32
    return %c0_i32, %c0_i32_0, %c0_i32_1 : i32, i32, i32
  }
  func.func @transform_4(%arg0: i32, %arg1: memref<1xi32, #tpu.memory_space<smem>>) -> (i32, i32, i32) {
    %c0_i32 = arith.constant 0 : i32
    %c0_i32_0 = arith.constant 0 : i32
    %c0_i32_1 = arith.constant 0 : i32
    %c0_i32_2 = arith.constant 0 : i32
    return %c0_i32, %c0_i32_0, %c0_i32_1 : i32, i32, i32
  }
  func.func @transform_5(%arg0: i32, %arg1: memref<1xi32, #tpu.memory_space<smem>>) -> (i32, i32, i32) {
    %c0_i32 = arith.constant 0 : i32
    %c0_i32_0 = arith.constant 0 : i32
    %c0_i32_1 = arith.constant 0 : i32
    %c0_i32_2 = arith.constant 0 : i32
    return %c0_i32, %c0_i32_0, %c0_i32_1 : i32, i32, i32
  }
  func.func @transform_6(%arg0: i32, %arg1: memref<1xi32, #tpu.memory_space<smem>>) -> (i32, i32, i32) {
    %c0_i32 = arith.constant 0 : i32
    %c0_i32_0 = arith.constant 0 : i32
    %c0_i32_1 = arith.constant 0 : i32
    %c0_i32_2 = arith.constant 0 : i32
    return %c0_i32, %c0_i32_0, %c0_i32_1 : i32, i32, i32
  }
  func.func @transform_7(%arg0: i32, %arg1: memref<1xi32, #tpu.memory_space<smem>>) -> (i32, i32, i32) {
    %c0_i32 = arith.constant 0 : i32
    %c0_i32_0 = arith.constant 0 : i32
    %c0_i32_1 = arith.constant 0 : i32
    %c0_i32_2 = arith.constant 0 : i32
    return %c0_i32, %c0_i32_0, %c0_i32_1 : i32, i32, i32
  }
}

</mosaic_0001>

<llo_original>
// kernel: tpu_custom_call.1
$region0: #{tpu_custom_call.1}
  #allocation0 [shape = 'u32[]', space=smem, size = 0x4, offset = 0x4, fixed_abs, tag = 'smem constant byte address 0x4 - core index']
  #allocation1 [shape = 'u32[144,128]{1,0:T(1,128)}', space=vmem, size = 0x12000, scoped, tag = 'internal scratch']
  #allocation2 [shape = 's32[1]{0}', space=sflag, size = 0x4, scoped, tag = 'scoped memory for tpu_custom_call.1']
  #allocation3 [shape = 's32[1]{0:T(128)S(6)}', space=smem, size = 0x200, scoped, tag = 'prefetched SMEM operand 0']
  %s0 = inlined_call_operand.<no memory space> [shape: s32[1], index: 0, kind: input, shape index: {}]
  %s1 = inlined_call_operand.hbm [shape: f32[16,1,128], index: 1, kind: input, shape index: {}]
  %s2 = inlined_call_operand.hbm [shape: f32[2,256,512], index: 2, kind: input, shape index: {}]
  %s3 = inlined_call_operand.vmem [shape: f32[2,1,512], index: 3, kind: input, shape index: {}]
  %s4 = inlined_call_operand.vmem [shape: f32[2,1,128], index: 4, kind: input, shape index: {}]
  %s5 = inlined_call_operand.vmem [shape: f32[2,1,128], index: 5, kind: input, shape index: {}]
  %s6 = inlined_call_operand.hbm [shape: f32[1,1,128], index: 6, kind: output, shape index: {0}]
  %s7 = inlined_call_operand.hbm [shape: f32[2,1,128], index: 7, kind: output, shape index: {1}]
  %s8 = inlined_call_operand.hbm [shape: f32[2,1,128], index: 8, kind: output, shape index: {2}]
  %9 = xla_tuple %s6, %s7, %s8
  %s10 = sld [smem:[#allocation0]]
  $region54: #{tpu_custom_call.1} parent=0
    _
  %s12 = ssub.s32 1, %s10
  %s13 = scalar_select 0, %s12, %s10
  %14 = sst [smem:[#allocation3]] %s0
  $region1: #{tpu_custom_call.1} parent=0
    #allocation4 [shape = 'u8[512]{0}', space=vmem, size = 0x400, scoped, tag = 'input window, operand 1, single buffered']
    #allocation5 [shape = 's32[1]{0}', space=sflag, size = 0x4, scoped, tag = 'scoped memory for tpu_custom_call.1']
    #allocation6 [shape = 's32[1]{0}', space=sflag, size = 0x4, scoped, tag = 'scoped memory for tpu_custom_call.1']
    #allocation7 [shape = 'u8[1048576]{0}', space=vmem, size = 0x100000, scoped, tag = 'input window, operand 2, single buffered']
    #allocation8 [shape = 's32[1]{0}', space=sflag, size = 0x4, scoped, tag = 'scoped memory for tpu_custom_call.1']
    #allocation9 [shape = 'u8[512]{0}', space=vmem, size = 0x400, scoped, tag = 'output window, operand 0, single buffered']
    #allocation10 [shape = 'u8[1024]{0}', space=vmem, size = 0x400, scoped, tag = 'output window, operand 1, single buffered']
    #allocation11 [shape = 's32[1]{0}', space=sflag, size = 0x4, scoped, tag = 'scoped memory for tpu_custom_call.1']
    #allocation12 [shape = 'u8[1024]{0}', space=vmem, size = 0x400, scoped, tag = 'output window, operand 2, single buffered']
    %15 = vsyncpa [#allocation5], 0
    %16 = vsyncpa [#allocation8], 0
    %17 = vsyncpa [#allocation6], 0
    %18 = vsyncpa [#allocation11], 0
    // Predicated region
    $region2: #{tpu_custom_call.1} parent=1 // pred_check
      _
    $region3: #{tpu_custom_call.1} parent=1 // pred_check_branch
      %20 = sbr.rel (0) target = $region5
    $region4: #{tpu_custom_call.1} parent=1 // pred_region
      %s21 = sld [smem:[#allocation3]]
      %s23 = ssub.s32 16, 16
      %24 = vsyncadd [#allocation5], %s23
      %s25 = smul.addr %s21, 16
      %s26 = scalar_lea.hbm %s1, %s25
      %s28 = sshll.u32 [#allocation4], 4
      %s29 = int_to_ptr.vmem [resolvable:$true] %s28
      %31 = dma.hbm_to_vmem [thread:$0]  %s26, 16, %s29, [#allocation5]
    $region5: #{tpu_custom_call.1} parent=1 // pred_fallthru
      _
    // Predicated region
    $region6: #{tpu_custom_call.1} parent=1 // pred_check
      _
    $region7: #{tpu_custom_call.1} parent=1 // pred_check_branch
      %33 = sbr.rel (0) target = $region9
    $region8: #{tpu_custom_call.1} parent=1 // pred_region
      %s35 = ssub.s32 32768, 32768
      %36 = vsyncadd [#allocation8], %s35
      %s37 = sshll.u32 [#allocation7], 4
      %s38 = int_to_ptr.vmem [resolvable:$true] %s37
      %43 = dma.hbm_to_vmem [thread:$0]  %s2, 32768, %s38, [#allocation8], 512, 512, 32
    $region9: #{tpu_custom_call.1} parent=1 // pred_fallthru
      _
    // Predicated region
    $region10: #{tpu_custom_call.1} parent=1 // pred_check
      _
    $region11: #{tpu_custom_call.1} parent=1 // pred_check_branch
      %45 = sbr.rel (0) target = $region13
    $region12: #{tpu_custom_call.1} parent=1 // pred_region
      _
    $region13: #{tpu_custom_call.1} parent=1 // pred_fallthru
      _
    // Predicated region
    $region14: #{tpu_custom_call.1} parent=1 // pred_check
      _
    $region15: #{tpu_custom_call.1} parent=1 // pred_check_branch
      %47 = sbr.rel (0) target = $region17
    $region16: #{tpu_custom_call.1} parent=1 // pred_region
      _
    $region17: #{tpu_custom_call.1} parent=1 // pred_fallthru
      _
    // Predicated region
    $region18: #{tpu_custom_call.1} parent=1 // pred_check
      _
    $region19: #{tpu_custom_call.1} parent=1 // pred_check_branch
      %49 = sbr.rel (0) target = $region21
    $region20: #{tpu_custom_call.1} parent=1 // pred_region
      _
    $region21: #{tpu_custom_call.1} parent=1 // pred_fallthru
      _
    // Predicated region
    $region22: #{tpu_custom_call.1} parent=1 // pred_check
      _
    $region23: #{tpu_custom_call.1} parent=1 // pred_check_branch
      %51 = sbr.rel (0) target = $region25
    $region24: #{tpu_custom_call.1} parent=1 // pred_region
      %52 = dma.done [#allocation5], 16
    $region25: #{tpu_custom_call.1} parent=1 // pred_fallthru
      _
    // Predicated region
    $region26: #{tpu_custom_call.1} parent=1 // pred_check
      _
    $region27: #{tpu_custom_call.1} parent=1 // pred_check_branch
      %54 = sbr.rel (0) target = $region29
    $region28: #{tpu_custom_call.1} parent=1 // pred_region
      %55 = dma.done [#allocation8], 32768
    $region29: #{tpu_custom_call.1} parent=1 // pred_fallthru
      _
    %s56 = sld [smem:[#allocation3]]
    %v57 = vld [vmem:[#allocation4] sm:$0x1]
    %v58 = vld [vmem:[%s4] sm:$0x1]
    %v59 = vld [vmem:[%s5] sm:$0x1]
    %v60 = vld [vmem:[#allocation7] sm:$0xff]
    %v61 = vld [vmem:[#allocation7 + $0x8] sm:$0xff]
    %v62 = vld [vmem:[#allocation7 + $0x10] sm:$0xff]
    %v63 = vld [vmem:[#allocation7 + $0x18] sm:$0xff]
    %v64 = vld [vmem:[#allocation7 + $0x20] sm:$0xff]
    %v65 = vld [vmem:[#allocation7 + $0x28] sm:$0xff]
    %v66 = vld [vmem:[#allocation7 + $0x30] sm:$0xff]
    %v67 = vld [vmem:[#allocation7 + $0x38] sm:$0xff]
    %v68 = vld [vmem:[#allocation7 + $0x40] sm:$0xff]
    %v69 = vld [vmem:[#allocation7 + $0x48] sm:$0xff]
    %v70 = vld [vmem:[#allocation7 + $0x50] sm:$0xff]
    %v71 = vld [vmem:[#allocation7 + $0x58] sm:$0xff]
    %v72 = vld [vmem:[#allocation7 + $0x60] sm:$0xff]
    %v73 = vld [vmem:[#allocation7 + $0x68] sm:$0xff]
    %v74 = vld [vmem:[#allocation7 + $0x70] sm:$0xff]
    %v75 = vld [vmem:[#allocation7 + $0x78] sm:$0xff]
    %v76 = vld [vmem:[#allocation7 + $0x80] sm:$0xff]
    %v77 = vld [vmem:[#allocation7 + $0x88] sm:$0xff]
    %v78 = vld [vmem:[#allocation7 + $0x90] sm:$0xff]
    %v79 = vld [vmem:[#allocation7 + $0x98] sm:$0xff]
    %v80 = vld [vmem:[#allocation7 + $0xa0] sm:$0xff]
    %v81 = vld [vmem:[#allocation7 + $0xa8] sm:$0xff]
    %v82 = vld [vmem:[#allocation7 + $0xb0] sm:$0xff]
    %v83 = vld [vmem:[#allocation7 + $0xb8] sm:$0xff]
    %v84 = vld [vmem:[#allocation7 + $0xc0] sm:$0xff]
    %v85 = vld [vmem:[#allocation7 + $0xc8] sm:$0xff]
    %v86 = vld [vmem:[#allocation7 + $0xd0] sm:$0xff]
    %v87 = vld [vmem:[#allocation7 + $0xd8] sm:$0xff]
    %v88 = vld [vmem:[#allocation7 + $0xe0] sm:$0xff]
    %v89 = vld [vmem:[#allocation7 + $0xe8] sm:$0xff]
    %v90 = vld [vmem:[#allocation7 + $0xf0] sm:$0xff]
    %v91 = vld [vmem:[#allocation7 + $0xf8] sm:$0xff]
    %v92 = vld [vmem:[#allocation7 + $0x100] sm:$0xff]
    %v93 = vld [vmem:[#allocation7 + $0x108] sm:$0xff]
    %v94 = vld [vmem:[#allocation7 + $0x110] sm:$0xff]
    %v95 = vld [vmem:[#allocation7 + $0x118] sm:$0xff]
    %v96 = vld [vmem:[#allocation7 + $0x120] sm:$0xff]
    %v97 = vld [vmem:[#allocation7 + $0x128] sm:$0xff]
    %v98 = vld [vmem:[#allocation7 + $0x130] sm:$0xff]
    %v99 = vld [vmem:[#allocation7 + $0x138] sm:$0xff]
    %v100 = vld [vmem:[#allocation7 + $0x140] sm:$0xff]
    %v101 = vld [vmem:[#allocation7 + $0x148] sm:$0xff]
    %v102 = vld [vmem:[#allocation7 + $0x150] sm:$0xff]
    %v103 = vld [vmem:[#allocation7 + $0x158] sm:$0xff]
    %v104 = vld [vmem:[#allocation7 + $0x160] sm:$0xff]
    %v105 = vld [vmem:[#allocation7 + $0x168] sm:$0xff]
    %v106 = vld [vmem:[#allocation7 + $0x170] sm:$0xff]
    %v107 = vld [vmem:[#allocation7 + $0x178] sm:$0xff]
    %v108 = vld [vmem:[#allocation7 + $0x180] sm:$0xff]
    %v109 = vld [vmem:[#allocation7 + $0x188] sm:$0xff]
    %v110 = vld [vmem:[#allocation7 + $0x190] sm:$0xff]
    %v111 = vld [vmem:[#allocation7 + $0x198] sm:$0xff]
    %v112 = vld [vmem:[#allocation7 + $0x1a0] sm:$0xff]
    %v113 = vld [vmem:[#allocation7 + $0x1a8] sm:$0xff]
    %v114 = vld [vmem:[#allocation7 + $0x1b0] sm:$0xff]
    %v115 = vld [vmem:[#allocation7 + $0x1b8] sm:$0xff]
    %v116 = vld [vmem:[#allocation7 + $0x1c0] sm:$0xff]
    %v117 = vld [vmem:[#allocation7 + $0x1c8] sm:$0xff]
    %v118 = vld [vmem:[#allocation7 + $0x1d0] sm:$0xff]
    %v119 = vld [vmem:[#allocation7 + $0x1d8] sm:$0xff]
    %v120 = vld [vmem:[#allocation7 + $0x1e0] sm:$0xff]
    %v121 = vld [vmem:[#allocation7 + $0x1e8] sm:$0xff]
    %v122 = vld [vmem:[#allocation7 + $0x1f0] sm:$0xff]
    %v123 = vld [vmem:[#allocation7 + $0x1f8] sm:$0xff]
    %v124 = vld [vmem:[#allocation7 + $0x200] sm:$0xff]
    %v125 = vld [vmem:[#allocation7 + $0x208] sm:$0xff]
    %v126 = vld [vmem:[#allocation7 + $0x210] sm:$0xff]
    %v127 = vld [vmem:[#allocation7 + $0x218] sm:$0xff]
    %v128 = vld [vmem:[#allocation7 + $0x220] sm:$0xff]
    %v129 = vld [vmem:[#allocation7 + $0x228] sm:$0xff]
    %v130 = vld [vmem:[#allocation7 + $0x230] sm:$0xff]
    %v131 = vld [vmem:[#allocation7 + $0x238] sm:$0xff]
    %v132 = vld [vmem:[#allocation7 + $0x240] sm:$0xff]
    %v133 = vld [vmem:[#allocation7 + $0x248] sm:$0xff]
    %v134 = vld [vmem:[#allocation7 + $0x250] sm:$0xff]
    %v135 = vld [vmem:[#allocation7 + $0x258] sm:$0xff]
    %v136 = vld [vmem:[#allocation7 + $0x260] sm:$0xff]
    %v137 = vld [vmem:[#allocation7 + $0x268] sm:$0xff]
    %v138 = vld [vmem:[#allocation7 + $0x270] sm:$0xff]
    %v139 = vld [vmem:[#allocation7 + $0x278] sm:$0xff]
    %v140 = vld [vmem:[#allocation7 + $0x280] sm:$0xff]
    %v141 = vld [vmem:[#allocation7 + $0x288] sm:$0xff]
    %v142 = vld [vmem:[#allocation7 + $0x290] sm:$0xff]
    %v143 = vld [vmem:[#allocation7 + $0x298] sm:$0xff]
    %v144 = vld [vmem:[#allocation7 + $0x2a0] sm:$0xff]
    %v145 = vld [vmem:[#allocation7 + $0x2a8] sm:$0xff]
    %v146 = vld [vmem:[#allocation7 + $0x2b0] sm:$0xff]
    %v147 = vld [vmem:[#allocation7 + $0x2b8] sm:$0xff]
    %v148 = vld [vmem:[#allocation7 + $0x2c0] sm:$0xff]
    %v149 = vld [vmem:[#allocation7 + $0x2c8] sm:$0xff]
    %v150 = vld [vmem:[#allocation7 + $0x2d0] sm:$0xff]
    %v151 = vld [vmem:[#allocation7 + $0x2d8] sm:$0xff]
    %v152 = vld [vmem:[#allocation7 + $0x2e0] sm:$0xff]
    %v153 = vld [vmem:[#allocation7 + $0x2e8] sm:$0xff]
    %v154 = vld [vmem:[#allocation7 + $0x2f0] sm:$0xff]
    %v155 = vld [vmem:[#allocation7 + $0x2f8] sm:$0xff]
    %v156 = vld [vmem:[#allocation7 + $0x300] sm:$0xff]
    %v157 = vld [vmem:[#allocation7 + $0x308] sm:$0xff]
    %v158 = vld [vmem:[#allocation7 + $0x310] sm:$0xff]
    %v159 = vld [vmem:[#allocation7 + $0x318] sm:$0xff]
    %v160 = vld [vmem:[#allocation7 + $0x320] sm:$0xff]
    %v161 = vld [vmem:[#allocation7 + $0x328] sm:$0xff]
    %v162 = vld [vmem:[#allocation7 + $0x330] sm:$0xff]
    %v163 = vld [vmem:[#allocation7 + $0x338] sm:$0xff]
    %v164 = vld [vmem:[#allocation7 + $0x340] sm:$0xff]
    %v165 = vld [vmem:[#allocation7 + $0x348] sm:$0xff]
    %v166 = vld [vmem:[#allocation7 + $0x350] sm:$0xff]
    %v167 = vld [vmem:[#allocation7 + $0x358] sm:$0xff]
    %v168 = vld [vmem:[#allocation7 + $0x360] sm:$0xff]
    %v169 = vld [vmem:[#allocation7 + $0x368] sm:$0xff]
    %v170 = vld [vmem:[#allocation7 + $0x370] sm:$0xff]
    %v171 = vld [vmem:[#allocation7 + $0x378] sm:$0xff]
    %v172 = vld [vmem:[#allocation7 + $0x380] sm:$0xff]
    %v173 = vld [vmem:[#allocation7 + $0x388] sm:$0xff]
    %v174 = vld [vmem:[#allocation7 + $0x390] sm:$0xff]
    %v175 = vld [vmem:[#allocation7 + $0x398] sm:$0xff]
    %v176 = vld [vmem:[#allocation7 + $0x3a0] sm:$0xff]
    %v177 = vld [vmem:[#allocation7 + $0x3a8] sm:$0xff]
    %v178 = vld [vmem:[#allocation7 + $0x3b0] sm:$0xff]
    %v179 = vld [vmem:[#allocation7 + $0x3b8] sm:$0xff]
    %v180 = vld [vmem:[#allocation7 + $0x3c0] sm:$0xff]
    %v181 = vld [vmem:[#allocation7 + $0x3c8] sm:$0xff]
    %v182 = vld [vmem:[#allocation7 + $0x3d0] sm:$0xff]
    %v183 = vld [vmem:[#allocation7 + $0x3d8] sm:$0xff]
    %v184 = vld [vmem:[#allocation7 + $0x3e0] sm:$0xff]
    %v185 = vld [vmem:[#allocation7 + $0x3e8] sm:$0xff]
    %v186 = vld [vmem:[#allocation7 + $0x3f0] sm:$0xff]
    %v187 = vld [vmem:[#allocation7 + $0x3f8] sm:$0xff]
    %v188 = vld [vmem:[%s3] sm:$0xf]
    %v190 = vlaneseq
    %v191 = vshrl.u32 %v190, 7
    %v192 = vsub.s32 0, %v191
    %v193 = vrot.slane %v188, %v192
    %v194 = vlaneseq
    %v195 = vshrl.u32 %v194, 7
    %v196 = vsub.s32 1, %v195
    %v197 = vrot.slane %v188, %v196
    %v198 = vlaneseq
    %v199 = vshrl.u32 %v198, 7
    %v200 = vsub.s32 2, %v199
    %v201 = vrot.slane %v188, %v200
    %v202 = vlaneseq
    %v203 = vshrl.u32 %v202, 7
    %v204 = vsub.s32 3, %v203
    %v205 = vrot.slane %v188, %v204
    %210 = vmatprep.subr.mxu0 %v61
    %211 = vmatpush1.msra.mxu0 %v60
    %212 = vmatprep.subr.mxu0 %v65
    %213 = vmatpush1.msra.mxu0 %v64
    %214 = vmatprep.subr.mxu0 %v69
    %215 = vmatpush1.msra.mxu0 %v68
    %216 = vmatprep.subr.mxu0 %v73
    %217 = vmatpush1.msra.mxu0 %v72
    %218 = vmatprep.subr.mxu0 %v77
    %219 = vmatpush1.msra.mxu0 %v76
    %220 = vmatprep.subr.mxu0 %v81
    %221 = vmatpush1.msra.mxu0 %v80
    %222 = vmatprep.subr.mxu0 %v85
    %223 = vmatpush1.msra.mxu0 %v84
    %224 = vmatprep.subr.mxu0 %v89
    %225 = vmatpush1.msra.mxu0 %v88
    %226 = vmatprep.subr.mxu0 %v93
    %227 = vmatpush1.msra.mxu0 %v92
    %228 = vmatprep.subr.mxu0 %v97
    %229 = vmatpush1.msra.mxu0 %v96
    %230 = vmatprep.subr.mxu0 %v101
    %231 = vmatpush1.msra.mxu0 %v100
    %232 = vmatprep.subr.mxu0 %v105
    %233 = vmatpush1.msra.mxu0 %v104
    %234 = vmatprep.subr.mxu0 %v109
    %235 = vmatpush1.msra.mxu0 %v108
    %236 = vmatprep.subr.mxu0 %v113
    %237 = vmatpush1.msra.mxu0 %v112
    %238 = vmatprep.subr.mxu0 %v117
    %239 = vmatpush1.msra.mxu0 %v116
    %240 = vmatprep.subr.mxu0 %v121
    %241 = vmatpush1.msra.mxu0 %v120
    %242 = vmatprep.subr.mxu0 %v125
    %243 = vmatpush1.msra.mxu0 %v124
    %244 = vmatprep.subr.mxu0 %v129
    %245 = vmatpush1.msra.mxu0 %v128
    %246 = vmatprep.subr.mxu0 %v133
    %247 = vmatpush1.msra.mxu0 %v132
    %248 = vmatprep.subr.mxu0 %v137
    %249 = vmatpush1.msra.mxu0 %v136
    %250 = vmatprep.subr.mxu0 %v141
    %251 = vmatpush1.msra.mxu0 %v140
    %252 = vmatprep.subr.mxu0 %v145
    %253 = vmatpush1.msra.mxu0 %v144
    %254 = vmatprep.subr.mxu0 %v149
    %255 = vmatpush1.msra.mxu0 %v148
    %256 = vmatprep.subr.mxu0 %v153
    %257 = vmatpush1.msra.mxu0 %v152
    %258 = vmatprep.subr.mxu0 %v157
    %259 = vmatpush1.msra.mxu0 %v156
    %260 = vmatprep.subr.mxu0 %v161
    %261 = vmatpush1.msra.mxu0 %v160
    %262 = vmatprep.subr.mxu0 %v165
    %263 = vmatpush1.msra.mxu0 %v164
    %264 = vmatprep.subr.mxu0 %v169
    %265 = vmatpush1.msra.mxu0 %v168
    %266 = vmatprep.subr.mxu0 %v173
    %267 = vmatpush1.msra.mxu0 %v172
    %268 = vmatprep.subr.mxu0 %v177
    %269 = vmatpush1.msra.mxu0 %v176
    %270 = vmatprep.subr.mxu0 %v181
    %271 = vmatpush1.msra.mxu0 %v180
    %272 = vmatprep.subr.mxu0 %v185
    %273 = vmatpush1.msra.mxu0 %v184
    %274 = vmatprep.mubr.f32.mxu0 %v58
    %275 = vmatmul.mubr.f32.gmra.mrb[0].mxu0 %v57
    %v276 = vpop.f32.mrb[0].mxu0
    %v277 = vadd.f32 %v193, %v276
    %v278 = vpop.f32.mrb[0].mxu0
    %v279 = vadd.f32 %v197, %v278
    %280 = vdwg.mxu0
    %281 = vmatprep.subr.mxu0 %v63
    %282 = vmatpush1.msra.mxu0 %v62
    %283 = vmatprep.subr.mxu0 %v67
    %284 = vmatpush1.msra.mxu0 %v66
    %285 = vmatprep.subr.mxu0 %v71
    %286 = vmatpush1.msra.mxu0 %v70
    %287 = vmatprep.subr.mxu0 %v75
    %288 = vmatpush1.msra.mxu0 %v74
    %289 = vmatprep.subr.mxu0 %v79
    %290 = vmatpush1.msra.mxu0 %v78
    %291 = vmatprep.subr.mxu0 %v83
    %292 = vmatpush1.msra.mxu0 %v82
    %293 = vmatprep.subr.mxu0 %v87
    %294 = vmatpush1.msra.mxu0 %v86
    %295 = vmatprep.subr.mxu0 %v91
    %296 = vmatpush1.msra.mxu0 %v90
    %297 = vmatprep.subr.mxu0 %v95
    %298 = vmatpush1.msra.mxu0 %v94
    %299 = vmatprep.subr.mxu0 %v99
    %300 = vmatpush1.msra.mxu0 %v98
    %301 = vmatprep.subr.mxu0 %v103
    %302 = vmatpush1.msra.mxu0 %v102
    %303 = vmatprep.subr.mxu0 %v107
    %304 = vmatpush1.msra.mxu0 %v106
    %305 = vmatprep.subr.mxu0 %v111
    %306 = vmatpush1.msra.mxu0 %v110
    %307 = vmatprep.subr.mxu0 %v115
    %308 = vmatpush1.msra.mxu0 %v114
    %309 = vmatprep.subr.mxu0 %v119
    %310 = vmatpush1.msra.mxu0 %v118
    %311 = vmatprep.subr.mxu0 %v123
    %312 = vmatpush1.msra.mxu0 %v122
    %313 = vmatprep.subr.mxu0 %v127
    %314 = vmatpush1.msra.mxu0 %v126
    %315 = vmatprep.subr.mxu0 %v131
    %316 = vmatpush1.msra.mxu0 %v130
    %317 = vmatprep.subr.mxu0 %v135
    %318 = vmatpush1.msra.mxu0 %v134
    %319 = vmatprep.subr.mxu0 %v139
    %320 = vmatpush1.msra.mxu0 %v138
    %321 = vmatprep.subr.mxu0 %v143
    %322 = vmatpush1.msra.mxu0 %v142
    %323 = vmatprep.subr.mxu0 %v147
    %324 = vmatpush1.msra.mxu0 %v146
    %325 = vmatprep.subr.mxu0 %v151
    %326 = vmatpush1.msra.mxu0 %v150
    %327 = vmatprep.subr.mxu0 %v155
    %328 = vmatpush1.msra.mxu0 %v154
    %329 = vmatprep.subr.mxu0 %v159
    %330 = vmatpush1.msra.mxu0 %v158
    %331 = vmatprep.subr.mxu0 %v163
    %332 = vmatpush1.msra.mxu0 %v162
    %333 = vmatprep.subr.mxu0 %v167
    %334 = vmatpush1.msra.mxu0 %v166
    %335 = vmatprep.subr.mxu0 %v171
    %336 = vmatpush1.msra.mxu0 %v170
    %337 = vmatprep.subr.mxu0 %v175
    %338 = vmatpush1.msra.mxu0 %v174
    %339 = vmatprep.subr.mxu0 %v179
    %340 = vmatpush1.msra.mxu0 %v178
    %341 = vmatprep.subr.mxu0 %v183
    %342 = vmatpush1.msra.mxu0 %v182
    %343 = vmatprep.subr.mxu0 %v187
    %344 = vmatpush1.msra.mxu0 %v186
    %345 = vmatprep.mubr.f32.mxu0 %v58
    %346 = vmatmul.mubr.f32.gmra.mrb[0].mxu0 %v57
    %v347 = vpop.f32.mrb[0].mxu0
    %v348 = vadd.f32 %v201, %v347
    %v349 = vpop.f32.mrb[0].mxu0
    %v350 = vadd.f32 %v205, %v349
    %351 = vdwg.mxu0
    %v352 = vxor.u32 %v277, 2147483648
    %v353 = vmul.f32 %v352, 1.442695
    %v354 = vpow.pop %v353
    %v355 = vadd.f32 %v354, 1.0
    %v356 = vrcp.pop %v355
    %v357 = vmul.f32 1.0, %v356
    %v358 = vxor.u32 %v279, 2147483648
    %v359 = vmul.f32 %v358, 1.442695
    %v360 = vpow.pop %v359
    %v361 = vadd.f32 %v360, 1.0
    %v362 = vrcp.pop %v361
    %v363 = vmul.f32 1.0, %v362
    %v364 = vtanh.pop %v348
    %v365 = vxor.u32 %v350, 2147483648
    %v366 = vmul.f32 %v365, 1.442695
    %v367 = vpow.pop %v366
    %v368 = vadd.f32 %v367, 1.0
    %v369 = vrcp.pop %v368
    %v370 = vmul.f32 1.0, %v369
    %v371 = vmul.f32 %v363, %v59
    %v372 = vmul.f32 %v357, %v364
    %v373 = vadd.f32 %v371, %v372
    %v374 = vtanh.pop %v373
    %v375 = vmul.f32 %v370, %v374
    %376 = vst [vmem:[#allocation10] sm:$0x1] %v375
    %377 = vst [vmem:[#allocation12] sm:$0x1] %v373
    %s378 = scalar_lea.vmem %s4, 1
    %v379 = vld [vmem:[%s378] sm:$0x1]
    %s380 = scalar_lea.vmem %s5, 1
    %v381 = vld [vmem:[%s380] sm:$0x1]
    %s382 = scalar_lea.vmem [#allocation7], 1024
    %v383 = vld [vmem:[%s382] sm:$0xff]
    %v384 = vld [vmem:[%s382 + $0x8] sm:$0xff]
    %v385 = vld [vmem:[%s382 + $0x10] sm:$0xff]
    %v386 = vld [vmem:[%s382 + $0x18] sm:$0xff]
    %v387 = vld [vmem:[%s382 + $0x20] sm:$0xff]
    %v388 = vld [vmem:[%s382 + $0x28] sm:$0xff]
    %v389 = vld [vmem:[%s382 + $0x30] sm:$0xff]
    %v390 = vld [vmem:[%s382 + $0x38] sm:$0xff]
    %v391 = vld [vmem:[%s382 + $0x40] sm:$0xff]
    %v392 = vld [vmem:[%s382 + $0x48] sm:$0xff]
    %v393 = vld [vmem:[%s382 + $0x50] sm:$0xff]
    %v394 = vld [vmem:[%s382 + $0x58] sm:$0xff]
    %v395 = vld [vmem:[%s382 + $0x60] sm:$0xff]
    %v396 = vld [vmem:[%s382 + $0x68] sm:$0xff]
    %v397 = vld [vmem:[%s382 + $0x70] sm:$0xff]
    %v398 = vld [vmem:[%s382 + $0x78] sm:$0xff]
    %v399 = vld [vmem:[%s382 + $0x80] sm:$0xff]
    %v400 = vld [vmem:[%s382 + $0x88] sm:$0xff]
    %v401 = vld [vmem:[%s382 + $0x90] sm:$0xff]
    %v402 = vld [vmem:[%s382 + $0x98] sm:$0xff]
    %v403 = vld [vmem:[%s382 + $0xa0] sm:$0xff]
    %v404 = vld [vmem:[%s382 + $0xa8] sm:$0xff]
    %v405 = vld [vmem:[%s382 + $0xb0] sm:$0xff]
    %v406 = vld [vmem:[%s382 + $0xb8] sm:$0xff]
    %v407 = vld [vmem:[%s382 + $0xc0] sm:$0xff]
    %v408 = vld [vmem:[%s382 + $0xc8] sm:$0xff]
    %v409 = vld [vmem:[%s382 + $0xd0] sm:$0xff]
    %v410 = vld [vmem:[%s382 + $0xd8] sm:$0xff]
    %v411 = vld [vmem:[%s382 + $0xe0] sm:$0xff]
    %v412 = vld [vmem:[%s382 + $0xe8] sm:$0xff]
    %v413 = vld [vmem:[%s382 + $0xf0] sm:$0xff]
    %v414 = vld [vmem:[%s382 + $0xf8] sm:$0xff]
    %v415 = vld [vmem:[%s382 + $0x100] sm:$0xff]
    %v416 = vld [vmem:[%s382 + $0x108] sm:$0xff]
    %v417 = vld [vmem:[%s382 + $0x110] sm:$0xff]
    %v418 = vld [vmem:[%s382 + $0x118] sm:$0xff]
    %v419 = vld [vmem:[%s382 + $0x120] sm:$0xff]
    %v420 = vld [vmem:[%s382 + $0x128] sm:$0xff]
    %v421 = vld [vmem:[%s382 + $0x130] sm:$0xff]
    %v422 = vld [vmem:[%s382 + $0x138] sm:$0xff]
    %v423 = vld [vmem:[%s382 + $0x140] sm:$0xff]
    %v424 = vld [vmem:[%s382 + $0x148] sm:$0xff]
    %v425 = vld [vmem:[%s382 + $0x150] sm:$0xff]
    %v426 = vld [vmem:[%s382 + $0x158] sm:$0xff]
    %v427 = vld [vmem:[%s382 + $0x160] sm:$0xff]
    %v428 = vld [vmem:[%s382 + $0x168] sm:$0xff]
    %v429 = vld [vmem:[%s382 + $0x170] sm:$0xff]
    %v430 = vld [vmem:[%s382 + $0x178] sm:$0xff]
    %v431 = vld [vmem:[%s382 + $0x180] sm:$0xff]
    %v432 = vld [vmem:[%s382 + $0x188] sm:$0xff]
    %v433 = vld [vmem:[%s382 + $0x190] sm:$0xff]
    %v434 = vld [vmem:[%s382 + $0x198] sm:$0xff]
    %v435 = vld [vmem:[%s382 + $0x1a0] sm:$0xff]
    %v436 = vld [vmem:[%s382 + $0x1a8] sm:$0xff]
    %v437 = vld [vmem:[%s382 + $0x1b0] sm:$0xff]
    %v438 = vld [vmem:[%s382 + $0x1b8] sm:$0xff]
    %v439 = vld [vmem:[%s382 + $0x1c0] sm:$0xff]
    %v440 = vld [vmem:[%s382 + $0x1c8] sm:$0xff]
    %v441 = vld [vmem:[%s382 + $0x1d0] sm:$0xff]
    %v442 = vld [vmem:[%s382 + $0x1d8] sm:$0xff]
    %v443 = vld [vmem:[%s382 + $0x1e0] sm:$0xff]
    %v444 = vld [vmem:[%s382 + $0x1e8] sm:$0xff]
    %v445 = vld [vmem:[%s382 + $0x1f0] sm:$0xff]
    %v446 = vld [vmem:[%s382 + $0x1f8] sm:$0xff]
    %v447 = vld [vmem:[%s382 + $0x200] sm:$0xff]
    %v448 = vld [vmem:[%s382 + $0x208] sm:$0xff]
    %v449 = vld [vmem:[%s382 + $0x210] sm:$0xff]
    %v450 = vld [vmem:[%s382 + $0x218] sm:$0xff]
    %v451 = vld [vmem:[%s382 + $0x220] sm:$0xff]
    %v452 = vld [vmem:[%s382 + $0x228] sm:$0xff]
    %v453 = vld [vmem:[%s382 + $0x230] sm:$0xff]
    %v454 = vld [vmem:[%s382 + $0x238] sm:$0xff]
    %v455 = vld [vmem:[%s382 + $0x240] sm:$0xff]
    %v456 = vld [vmem:[%s382 + $0x248] sm:$0xff]
    %v457 = vld [vmem:[%s382 + $0x250] sm:$0xff]
    %v458 = vld [vmem:[%s382 + $0x258] sm:$0xff]
    %v459 = vld [vmem:[%s382 + $0x260] sm:$0xff]
    %v460 = vld [vmem:[%s382 + $0x268] sm:$0xff]
    %v461 = vld [vmem:[%s382 + $0x270] sm:$0xff]
    %v462 = vld [vmem:[%s382 + $0x278] sm:$0xff]
    %v463 = vld [vmem:[%s382 + $0x280] sm:$0xff]
    %v464 = vld [vmem:[%s382 + $0x288] sm:$0xff]
    %v465 = vld [vmem:[%s382 + $0x290] sm:$0xff]
    %v466 = vld [vmem:[%s382 + $0x298] sm:$0xff]
    %v467 = vld [vmem:[%s382 + $0x2a0] sm:$0xff]
    %v468 = vld [vmem:[%s382 + $0x2a8] sm:$0xff]
    %v469 = vld [vmem:[%s382 + $0x2b0] sm:$0xff]
    %v470 = vld [vmem:[%s382 + $0x2b8] sm:$0xff]
    %v471 = vld [vmem:[%s382 + $0x2c0] sm:$0xff]
    %v472 = vld [vmem:[%s382 + $0x2c8] sm:$0xff]
    %v473 = vld [vmem:[%s382 + $0x2d0] sm:$0xff]
    %v474 = vld [vmem:[%s382 + $0x2d8] sm:$0xff]
    %v475 = vld [vmem:[%s382 + $0x2e0] sm:$0xff]
    %v476 = vld [vmem:[%s382 + $0x2e8] sm:$0xff]
    %v477 = vld [vmem:[%s382 + $0x2f0] sm:$0xff]
    %v478 = vld [vmem:[%s382 + $0x2f8] sm:$0xff]
    %v479 = vld [vmem:[%s382 + $0x300] sm:$0xff]
    %v480 = vld [vmem:[%s382 + $0x308] sm:$0xff]
    %v481 = vld [vmem:[%s382 + $0x310] sm:$0xff]
    %v482 = vld [vmem:[%s382 + $0x318] sm:$0xff]
    %v483 = vld [vmem:[%s382 + $0x320] sm:$0xff]
    %v484 = vld [vmem:[%s382 + $0x328] sm:$0xff]
    %v485 = vld [vmem:[%s382 + $0x330] sm:$0xff]
    %v486 = vld [vmem:[%s382 + $0x338] sm:$0xff]
    %v487 = vld [vmem:[%s382 + $0x340] sm:$0xff]
    %v488 = vld [vmem:[%s382 + $0x348] sm:$0xff]
    %v489 = vld [vmem:[%s382 + $0x350] sm:$0xff]
    %v490 = vld [vmem:[%s382 + $0x358] sm:$0xff]
    %v491 = vld [vmem:[%s382 + $0x360] sm:$0xff]
    %v492 = vld [vmem:[%s382 + $0x368] sm:$0xff]
    %v493 = vld [vmem:[%s382 + $0x370] sm:$0xff]
    %v494 = vld [vmem:[%s382 + $0x378] sm:$0xff]
    %v495 = vld [vmem:[%s382 + $0x380] sm:$0xff]
    %v496 = vld [vmem:[%s382 + $0x388] sm:$0xff]
    %v497 = vld [vmem:[%s382 + $0x390] sm:$0xff]
    %v498 = vld [vmem:[%s382 + $0x398] sm:$0xff]
    %v499 = vld [vmem:[%s382 + $0x3a0] sm:$0xff]
    %v500 = vld [vmem:[%s382 + $0x3a8] sm:$0xff]
    %v501 = vld [vmem:[%s382 + $0x3b0] sm:$0xff]
    %v502 = vld [vmem:[%s382 + $0x3b8] sm:$0xff]
    %v503 = vld [vmem:[%s382 + $0x3c0] sm:$0xff]
    %v504 = vld [vmem:[%s382 + $0x3c8] sm:$0xff]
    %v505 = vld [vmem:[%s382 + $0x3d0] sm:$0xff]
    %v506 = vld [vmem:[%s382 + $0x3d8] sm:$0xff]
    %v507 = vld [vmem:[%s382 + $0x3e0] sm:$0xff]
    %v508 = vld [vmem:[%s382 + $0x3e8] sm:$0xff]
    %v509 = vld [vmem:[%s382 + $0x3f0] sm:$0xff]
    %v510 = vld [vmem:[%s382 + $0x3f8] sm:$0xff]
    %s511 = scalar_lea.vmem %s3, 4
    %v512 = vld [vmem:[%s511] sm:$0xf]
    %v514 = vlaneseq
    %v515 = vshrl.u32 %v514, 7
    %v516 = vsub.s32 0, %v515
    %v517 = vrot.slane %v512, %v516
    %v518 = vlaneseq
    %v519 = vshrl.u32 %v518, 7
    %v520 = vsub.s32 1, %v519
    %v521 = vrot.slane %v512, %v520
    %v522 = vlaneseq
    %v523 = vshrl.u32 %v522, 7
    %v524 = vsub.s32 2, %v523
    %v525 = vrot.slane %v512, %v524
    %v526 = vlaneseq
    %v527 = vshrl.u32 %v526, 7
    %v528 = vsub.s32 3, %v527
    %v529 = vrot.slane %v512, %v528
    %534 = vmatprep.subr.mxu0 %v384
    %535 = vmatpush1.msra.mxu0 %v383
    %536 = vmatprep.subr.mxu0 %v388
    %537 = vmatpush1.msra.mxu0 %v387
    %538 = vmatprep.subr.mxu0 %v392
    %539 = vmatpush1.msra.mxu0 %v391
    %540 = vmatprep.subr.mxu0 %v396
    %541 = vmatpush1.msra.mxu0 %v395
    %542 = vmatprep.subr.mxu0 %v400
    %543 = vmatpush1.msra.mxu0 %v399
    %544 = vmatprep.subr.mxu0 %v404
    %545 = vmatpush1.msra.mxu0 %v403
    %546 = vmatprep.subr.mxu0 %v408
    %547 = vmatpush1.msra.mxu0 %v407
    %548 = vmatprep.subr.mxu0 %v412
    %549 = vmatpush1.msra.mxu0 %v411
    %550 = vmatprep.subr.mxu0 %v416
    %551 = vmatpush1.msra.mxu0 %v415
    %552 = vmatprep.subr.mxu0 %v420
    %553 = vmatpush1.msra.mxu0 %v419
    %554 = vmatprep.subr.mxu0 %v424
    %555 = vmatpush1.msra.mxu0 %v423
    %556 = vmatprep.subr.mxu0 %v428
    %557 = vmatpush1.msra.mxu0 %v427
    %558 = vmatprep.subr.mxu0 %v432
    %559 = vmatpush1.msra.mxu0 %v431
    %560 = vmatprep.subr.mxu0 %v436
    %561 = vmatpush1.msra.mxu0 %v435
    %562 = vmatprep.subr.mxu0 %v440
    %563 = vmatpush1.msra.mxu0 %v439
    %564 = vmatprep.subr.mxu0 %v444
    %565 = vmatpush1.msra.mxu0 %v443
    %566 = vmatprep.subr.mxu0 %v448
    %567 = vmatpush1.msra.mxu0 %v447
    %568 = vmatprep.subr.mxu0 %v452
    %569 = vmatpush1.msra.mxu0 %v451
    %570 = vmatprep.subr.mxu0 %v456
    %571 = vmatpush1.msra.mxu0 %v455
    %572 = vmatprep.subr.mxu0 %v460
    %573 = vmatpush1.msra.mxu0 %v459
    %574 = vmatprep.subr.mxu0 %v464
    %575 = vmatpush1.msra.mxu0 %v463
    %576 = vmatprep.subr.mxu0 %v468
    %577 = vmatpush1.msra.mxu0 %v467
    %578 = vmatprep.subr.mxu0 %v472
    %579 = vmatpush1.msra.mxu0 %v471
    %580 = vmatprep.subr.mxu0 %v476
    %581 = vmatpush1.msra.mxu0 %v475
    %582 = vmatprep.subr.mxu0 %v480
    %583 = vmatpush1.msra.mxu0 %v479
    %584 = vmatprep.subr.mxu0 %v484
    %585 = vmatpush1.msra.mxu0 %v483
    %586 = vmatprep.subr.mxu0 %v488
    %587 = vmatpush1.msra.mxu0 %v487
    %588 = vmatprep.subr.mxu0 %v492
    %589 = vmatpush1.msra.mxu0 %v491
    %590 = vmatprep.subr.mxu0 %v496
    %591 = vmatpush1.msra.mxu0 %v495
    %592 = vmatprep.subr.mxu0 %v500
    %593 = vmatpush1.msra.mxu0 %v499
    %594 = vmatprep.subr.mxu0 %v504
    %595 = vmatpush1.msra.mxu0 %v503
    %596 = vmatprep.subr.mxu0 %v508
    %597 = vmatpush1.msra.mxu0 %v507
    %598 = vmatprep.mubr.f32.mxu0 %v379
    %599 = vmatmul.mubr.f32.gmra.mrb[0].mxu0 %v375
    %v600 = vpop.f32.mrb[0].mxu0
    %v601 = vadd.f32 %v517, %v600
    %v602 = vpop.f32.mrb[0].mxu0
    %v603 = vadd.f32 %v521, %v602
    %604 = vdwg.mxu0
    %605 = vmatprep.subr.mxu0 %v386
    %606 = vmatpush1.msra.mxu0 %v385
    %607 = vmatprep.subr.mxu0 %v390
    %608 = vmatpush1.msra.mxu0 %v389
    %609 = vmatprep.subr.mxu0 %v394
    %610 = vmatpush1.msra.mxu0 %v393
    %611 = vmatprep.subr.mxu0 %v398
    %612 = vmatpush1.msra.mxu0 %v397
    %613 = vmatprep.subr.mxu0 %v402
    %614 = vmatpush1.msra.mxu0 %v401
    %615 = vmatprep.subr.mxu0 %v406
    %616 = vmatpush1.msra.mxu0 %v405
    %617 = vmatprep.subr.mxu0 %v410
    %618 = vmatpush1.msra.mxu0 %v409
    %619 = vmatprep.subr.mxu0 %v414
    %620 = vmatpush1.msra.mxu0 %v413
    %621 = vmatprep.subr.mxu0 %v418
    %622 = vmatpush1.msra.mxu0 %v417
    %623 = vmatprep.subr.mxu0 %v422
    %624 = vmatpush1.msra.mxu0 %v421
    %625 = vmatprep.subr.mxu0 %v426
    %626 = vmatpush1.msra.mxu0 %v425
    %627 = vmatprep.subr.mxu0 %v430
    %628 = vmatpush1.msra.mxu0 %v429
    %629 = vmatprep.subr.mxu0 %v434
    %630 = vmatpush1.msra.mxu0 %v433
    %631 = vmatprep.subr.mxu0 %v438
    %632 = vmatpush1.msra.mxu0 %v437
    %633 = vmatprep.subr.mxu0 %v442
    %634 = vmatpush1.msra.mxu0 %v441
    %635 = vmatprep.subr.mxu0 %v446
    %636 = vmatpush1.msra.mxu0 %v445
    %637 = vmatprep.subr.mxu0 %v450
    %638 = vmatpush1.msra.mxu0 %v449
    %639 = vmatprep.subr.mxu0 %v454
    %640 = vmatpush1.msra.mxu0 %v453
    %641 = vmatprep.subr.mxu0 %v458
    %642 = vmatpush1.msra.mxu0 %v457
    %643 = vmatprep.subr.mxu0 %v462
    %644 = vmatpush1.msra.mxu0 %v461
    %645 = vmatprep.subr.mxu0 %v466
    %646 = vmatpush1.msra.mxu0 %v465
    %647 = vmatprep.subr.mxu0 %v470
    %648 = vmatpush1.msra.mxu0 %v469
    %649 = vmatprep.subr.mxu0 %v474
    %650 = vmatpush1.msra.mxu0 %v473
    %651 = vmatprep.subr.mxu0 %v478
    %652 = vmatpush1.msra.mxu0 %v477
    %653 = vmatprep.subr.mxu0 %v482
    %654 = vmatpush1.msra.mxu0 %v481
    %655 = vmatprep.subr.mxu0 %v486
    %656 = vmatpush1.msra.mxu0 %v485
    %657 = vmatprep.subr.mxu0 %v490
    %658 = vmatpush1.msra.mxu0 %v489
    %659 = vmatprep.subr.mxu0 %v494
    %660 = vmatpush1.msra.mxu0 %v493
    %661 = vmatprep.subr.mxu0 %v498
    %662 = vmatpush1.msra.mxu0 %v497
    %663 = vmatprep.subr.mxu0 %v502
    %664 = vmatpush1.msra.mxu0 %v501
    %665 = vmatprep.subr.mxu0 %v506
    %666 = vmatpush1.msra.mxu0 %v505
    %667 = vmatprep.subr.mxu0 %v510
    %668 = vmatpush1.msra.mxu0 %v509
    %669 = vmatprep.mubr.f32.mxu0 %v379
    %670 = vmatmul.mubr.f32.gmra.mrb[0].mxu0 %v375
    %v671 = vpop.f32.mrb[0].mxu0
    %v672 = vadd.f32 %v525, %v671
    %v673 = vpop.f32.mrb[0].mxu0
    %v674 = vadd.f32 %v529, %v673
    %675 = vdwg.mxu0
    %v676 = vxor.u32 %v601, 2147483648
    %v677 = vmul.f32 %v676, 1.442695
    %v678 = vpow.pop %v677
    %v679 = vadd.f32 %v678, 1.0
    %v680 = vrcp.pop %v679
    %v681 = vmul.f32 1.0, %v680
    %v682 = vxor.u32 %v603, 2147483648
    %v683 = vmul.f32 %v682, 1.442695
    %v684 = vpow.pop %v683
    %v685 = vadd.f32 %v684, 1.0
    %v686 = vrcp.pop %v685
    %v687 = vmul.f32 1.0, %v686
    %v688 = vtanh.pop %v672
    %v689 = vxor.u32 %v674, 2147483648
    %v690 = vmul.f32 %v689, 1.442695
    %v691 = vpow.pop %v690
    %v692 = vadd.f32 %v691, 1.0
    %v693 = vrcp.pop %v692
    %v694 = vmul.f32 1.0, %v693
    %v695 = vmul.f32 %v687, %v381
    %v696 = vmul.f32 %v681, %v688
    %v697 = vadd.f32 %v695, %v696
    %v698 = vtanh.pop %v697
    %v699 = vmul.f32 %v694, %v698
    %s700 = scalar_lea.vmem [#allocation10], 1
    %701 = vst [vmem:[%s700] sm:$0x1] %v699
    %s702 = scalar_lea.vmem [#allocation12], 1
    %703 = vst [vmem:[%s702] sm:$0x1] %v697
    %704 = vst [vmem:[#allocation9] sm:$0x1] %v699
    // Predicated region
    $region30: #{tpu_custom_call.1} parent=1 // pred_check
      _
    $region31: #{tpu_custom_call.1} parent=1 // pred_check_branch
      %706 = sbr.rel (0) target = $region33
    $region32: #{tpu_custom_call.1} parent=1 // pred_region
      %s708 = ssub.s32 16, 16
      %709 = vsyncadd [#allocation6], %s708
      %s711 = sshll.u32 [#allocation9], 4
      %s712 = int_to_ptr.vmem [resolvable:$true] %s711
      %714 = dma.vmem_to_hbm [thread:$0]  %s712, 16, %s6, [#allocation6]
    $region33: #{tpu_custom_call.1} parent=1 // pred_fallthru
      _
    // Predicated region
    $region34: #{tpu_custom_call.1} parent=1 // pred_check
      _
    $region35: #{tpu_custom_call.1} parent=1 // pred_check_branch
      %716 = sbr.rel (0) target = $region37
    $region36: #{tpu_custom_call.1} parent=1 // pred_region
      %s718 = ssub.s32 32, 32
      %719 = vsyncadd [#allocation11], %s718
      %s720 = sshll.u32 [#allocation10], 4
      %s721 = int_to_ptr.vmem [resolvable:$true] %s720
      %726 = dma.vmem_to_hbm [thread:$0]  %s721, 32, %s7, [#allocation11], 16, 16, 1
    $region37: #{tpu_custom_call.1} parent=1 // pred_fallthru
      _
    // Predicated region
    $region38: #{tpu_custom_call.1} parent=1 // pred_check
      _
    $region39: #{tpu_custom_call.1} parent=1 // pred_check_branch
      %728 = sbr.rel (0) target = $region41
    $region40: #{tpu_custom_call.1} parent=1 // pred_region
      %s730 = ssub.s32 32, 32
      %731 = vsyncadd [#allocation11], %s730
      %s732 = sshll.u32 [#allocation12], 4
      %s733 = int_to_ptr.vmem [resolvable:$true] %s732
      %738 = dma.vmem_to_hbm [thread:$0]  %s733, 32, %s8, [#allocation11], 16, 16, 1
    $region41: #{tpu_custom_call.1} parent=1 // pred_fallthru
      _
    // Predicated region
    $region42: #{tpu_custom_call.1} parent=1 // pred_check
      _
    $region43: #{tpu_custom_call.1} parent=1 // pred_check_branch
      %740 = sbr.rel (0) target = $region45
    $region44: #{tpu_custom_call.1} parent=1 // pred_region
      %741 = dma.done [#allocation6], 16
    $region45: #{tpu_custom_call.1} parent=1 // pred_fallthru
      _
    // Predicated region
    $region46: #{tpu_custom_call.1} parent=1 // pred_check
      _
    $region47: #{tpu_custom_call.1} parent=1 // pred_check_branch
      %743 = sbr.rel (0) target = $region49
    $region48: #{tpu_custom_call.1} parent=1 // pred_region
      %744 = dma.done [#allocation11], 32
    $region49: #{tpu_custom_call.1} parent=1 // pred_fallthru
      _
    // Predicated region
    $region50: #{tpu_custom_call.1} parent=1 // pred_check
      _
    $region51: #{tpu_custom_call.1} parent=1 // pred_check_branch
      %746 = sbr.rel (0) target = $region53
    $region52: #{tpu_custom_call.1} parent=1 // pred_region
      %747 = dma.done [#allocation11], 32
    $region53: #{tpu_custom_call.1} parent=1 // pred_fallthru
      _
    %748 = vsyncpa [#allocation5], 1
    %749 = vsyncpa [#allocation8], 1
    %750 = vsyncpa [#allocation6], 1
    %751 = vsyncpa [#allocation11], 1

</llo_original>
